<compile_context>
chip_gen: v5e
topology: v5e:2x2
jax: 0.10.0
libtpu: 0.0.40
codegen_flags: <defaults>
</compile_context>

<pallas_src>
import math

import jax
import jax.numpy as jnp
from jax.experimental import pallas as pl
from jax.experimental.pallas import tpu as pltpu


def dot_product_kernel(x_ref, w_ref, o_ref):
    # (tile_b, tile_f) * (1, tile_f) -> (tile_b, tile_f) on the VPU; the weight
    # row broadcasts across the batch/sublane axis.
    o_ref[...] = x_ref[...] * w_ref[...]


def _round_up(x, m):
    return ((x + m - 1) // m) * m


def dot_product(x, weight, *, tile_b=None, tile_f=None):
    """x: (B, F), weight: (F,). Returns x * weight (broadcast over B)."""
    B, F = x.shape
    assert weight.shape == (F,)

    dtype_size = jnp.dtype(x.dtype).itemsize
    # Rows per sublane group for this dtype (f32: 8, bf16: 16, int8/fp8: 32).
    sublane = {4: 8, 2: 16, 1: 32}.get(dtype_size, 8)

    # ---- Feature tile: whole feature axis unless it is very wide. ----------
    if tile_f is None:
        if F <= 8192 or F % 128 != 0:
            tile_f = F  # full-dim block is always layout-legal
        else:
            tile_f = 4096  # lane-dense multiple of 128
    n_f = pl.cdiv(F, tile_f)

    # ---- Batch tile: largest packing-aligned tile within the VMEM budget. --
    if tile_b is None:
        block_budget = 4 * 1024 * 1024  # bytes for one (tile_b, tile_f) block
        max_rows = max(sublane, block_budget // max(1, tile_f * dtype_size))
        tile_b = min(1024, (max_rows // sublane) * sublane)
        tile_b = max(tile_b, sublane)
        if B > sublane:
            # Keep at least 2 grid steps so both v7x TensorCores get work.
            tile_b = min(tile_b, _round_up(pl.cdiv(B, 2), sublane))
        else:
            tile_b = B  # tiny batch: full-dim block (always legal)
    n_b = pl.cdiv(B, tile_b)

    w2d = weight.reshape(1, F)

    # Scoped VMEM: 2 buffers x (x block + out block) + resident weight + margin.
    vmem_limit = int(4 * tile_b * tile_f * dtype_size
                     + 2 * tile_f * dtype_size
                     + (4 << 20))
    vmem_limit = max(vmem_limit, 16 << 20)
    vmem_limit = min(vmem_limit, 30 << 20)  # stay well inside v7x's 64 MiB VMEM

    return pl.pallas_call(
        dot_product_kernel,
        out_shape=jax.ShapeDtypeStruct((B, F), x.dtype),
        grid_spec=pltpu.PrefetchScalarGridSpec(
            num_scalar_prefetch=0,
            grid=(n_b, n_f),
            in_specs=[
                pl.BlockSpec((tile_b, tile_f), lambda i, j: (i, j)),
                # Weight block index is constant along the batch axis -> stays
                # resident in VMEM instead of being re-fetched per batch tile.
                pl.BlockSpec((1, tile_f), lambda i, j: (0, j)),
            ],
            out_specs=pl.BlockSpec((tile_b, tile_f), lambda i, j: (i, j)),
        ),
        compiler_params=pltpu.CompilerParams(
            dimension_semantics=("parallel", "parallel"),
            vmem_limit_bytes=vmem_limit,
        ),
    )(x, w2d)


if __name__ == "__main__":
    in_features = 128
    batch = 16

    key = jax.random.PRNGKey(0)
    kx, kw = jax.random.split(key)

    # Deterministic parameter init mirroring reset_parameters():
    # uniform(-stdv, stdv) with stdv = 1/sqrt(in_features).
    stdv = 1.0 / math.sqrt(in_features)
    weight = jax.random.uniform(
        kw, (in_features,), dtype=jnp.float32, minval=-stdv, maxval=stdv
    )

    x = jax.random.normal(kx, (batch, in_features), dtype=jnp.float32)

    out = dot_product(x, weight)
    out = jax.block_until_ready(out)

    # Correctness check against the plain-JAX reference of the PyTorch forward.
    ref = x * weight[None, :]
    assert out.shape == (batch, in_features)
    assert jnp.allclose(out, ref, atol=1e-6, rtol=1e-6)

    print("KERNEL_OK")
</pallas_src>

<mosaic_0001>
module attributes {stable_mosaic.version = 11 : i64} {
  func.func @dot_product_kernel(%arg0: i32, %arg1: i32, %arg2: memref<8x128xf32, #tpu.memory_space<vmem>>, %arg3: memref<1x128xf32, #tpu.memory_space<vmem>>, %arg4: memref<8x128xf32, #tpu.memory_space<vmem>>) attributes {dimension_semantics = [#tpu.dimension_semantics<parallel>, #tpu.dimension_semantics<parallel>], iteration_bounds = array<i64: 2, 1>, scalar_prefetch = 0 : i64, scratch_operands = 0 : i64, tpu.core_type = #tpu.core_type<tc>, window_params = [{transform_indices = @transform_0, window_bounds = array<i64: 8, 128>}, {transform_indices = @transform_1, window_bounds = array<i64: 1, 128>}, {transform_indices = @transform_2, window_bounds = array<i64: 8, 128>}]} {
    %c0 = arith.constant 0 : index
    %c0_0 = arith.constant 0 : index
    %0 = vector.load %arg2[%c0, %c0_0] : memref<8x128xf32, #tpu.memory_space<vmem>>, vector<8x128xf32>
    %c0_1 = arith.constant 0 : index
    %c0_2 = arith.constant 0 : index
    %1 = vector.load %arg3[%c0_1, %c0_2] : memref<1x128xf32, #tpu.memory_space<vmem>>, vector<1x128xf32>
    %2 = vector.broadcast %1 : vector<1x128xf32> to vector<8x128xf32>
    %3 = arith.mulf %0, %2 : vector<8x128xf32>
    %c0_3 = arith.constant 0 : index
    %c0_4 = arith.constant 0 : index
    %4 = vector.load %arg4[%c0_3, %c0_4] : memref<8x128xf32, #tpu.memory_space<vmem>>, vector<8x128xf32>
    tpu.vector_store %arg4[%c0_3, %c0_4], %3 {strides = array<i32>} : memref<8x128xf32, #tpu.memory_space<vmem>>, vector<8x128xf32>,
    return
  }
  func.func @transform_0(%arg0: i32, %arg1: i32) -> (i32, i32) {
    %c0_i32 = arith.constant 0 : i32
    return %arg0, %arg1 : i32, i32
  }
  func.func @transform_1(%arg0: i32, %arg1: i32) -> (i32, i32) {
    %c0_i32 = arith.constant 0 : i32
    %c0_i32_0 = arith.constant 0 : i32
    return %c0_i32, %arg1 : i32, i32
  }
  func.func @transform_2(%arg0: i32, %arg1: i32) -> (i32, i32) {
    %c0_i32 = arith.constant 0 : i32
    return %arg0, %arg1 : i32, i32
  }
}

</mosaic_0001>

<llo_original>
// kernel: tpu_custom_call.1
$region0: #{tpu_custom_call.1}
  #allocation0 [shape = 'u32[]', space=smem, size = 0x4, offset = 0x4, fixed_abs, tag = 'smem constant byte address 0x4 - core index']
  #allocation1 [shape = 'u32[72,128]{1,0:T(1,128)}', space=vmem, size = 0x9000, scoped, tag = 'internal scratch']
  %s0 = inlined_call_operand.hbm [shape: f32[16,128], index: 0, kind: input, shape index: {}]
  %s1 = inlined_call_operand.hbm [shape: f32[1,128], index: 1, kind: input, shape index: {}]
  %s2 = inlined_call_operand.hbm [shape: f32[16,128], index: 2, kind: output, shape index: {}]
  %s3 = sld [smem:[#allocation0]]
  $region49: #{tpu_custom_call.1} parent=0
    _
  %s5 = ssub.s32 1, %s3
  %s6 = scalar_select 0, %s5, %s3
  $region1: #{tpu_custom_call.1} parent=0
    #allocation2 [shape = 'u8[8192]{0}', space=vmem, size = 0x2000, scoped, tag = 'input window, operand 0']
    #allocation3 [shape = 's32[2]{0}', space=sflag, size = 0x8, scoped, tag = 'scoped memory for tpu_custom_call.1']
    #allocation4 [shape = 's32[2]{0}', space=sflag, size = 0x8, scoped, tag = 'scoped memory for tpu_custom_call.1']
    #allocation5 [shape = 'u8[512]{0}', space=vmem, size = 0x400, scoped, tag = 'input window, operand 1, single buffered']
    #allocation6 [shape = 's32[1]{0}', space=sflag, size = 0x4, scoped, tag = 'scoped memory for tpu_custom_call.1']
    #allocation7 [shape = 'u8[8192]{0}', space=vmem, size = 0x2000, scoped, tag = 'output window, operand 0']
    %7 = vsyncpa [#allocation3], 0
    %s8 = scalar_lea.sflag [#allocation3], 1
    %9 = vsyncpa %s8, 0
    %10 = vsyncpa [#allocation6], 0
    %11 = vsyncpa [#allocation4], 0
    %s12 = scalar_lea.sflag [#allocation4], 1
    %13 = vsyncpa %s12, 0
    loop: start=0, step=1, limit=4
    $region2: #{tpu_custom_call.1} parent=1 // loop_pre_header
      _
    $region3: #{tpu_custom_call.1} parent=1 // loop_header
      %s15 = sphi 0, %s19
      %p16 = scmp.ge.s32.totalorder %s15, 4
      %s22 = sphi 0, %s34
      %s23 = sphi 0, %s30
      %s24 = sphi 0, %s22
      %s25 = sphi 0, %s23
      %s26 = sphi 0, %s24
      %s27 = sphi 0, %s25
      %s39 = sphi 0, %s41
      %s42 = sphi 0, %s39
      %s43 = sphi 0, %s42
      %s59 = sphi 0, %s43
      %s65 = sphi 0, %s67
      %s68 = sphi 0, %s65
      %s69 = sphi 0, %s68
      %s85 = sphi 0, %s69
      %s93 = sphi 0, %s95
      %s96 = sphi 0, %s93
      %s97 = sphi 0, %s96
      %s113 = sphi 0, %s97
    $region4: #{tpu_custom_call.1} parent=1 // loop_header_branch
      %18 = sbr.rel (%p16) target = $region8
    $region5: #{tpu_custom_call.1} parent=1 // loop_body
      %s20 = ssub.s32 %s15, 1
      %s21 = ssub.s32 %s15, 2
      %s28 = sadd.s32 1, %s23
      %p29 = scmp.ge.s32.totalorder %s28, 1
      %s30 = scalar_select %p29, 0, %s28
      %s31 = sadd.s32 1, %s22
      %s32 = scalar_select %p29, %s31, %s22
      %p33 = scmp.ge.s32.totalorder %s32, 2
      %s34 = scalar_select %p33, 0, %s32
      %s35 = ssub.s32 %s22, %s34
      %s36 = ssub.s32 %s23, %s30
      %s37 = sor.u32 %s35, %s36
      %p38 = scmp.eq.s32.totalorder %s37, 0
      %s40 = sadd.s32 %s39, 1
      %s41 = scalar_select %p38, %s39, %s40
      %p44 = pneg %p38
      %p45 = scmp.eq.s32.totalorder %s15, 1
      %p46 = por %p44, %p45
      %p47 = scmp.ne.s32.totalorder %s39, %s42
      %p48 = scmp.eq.s32.totalorder %s15, 0
      %p49 = por %p47, %p48
      %p50 = scmp.ne.s32.totalorder %s39, %s42
      %p51 = scmp.eq.s32.totalorder %s20, 1
      %p52 = por %p50, %p51
      %p53 = scmp.ne.s32.totalorder %s42, %s43
      %p54 = scmp.eq.s32.totalorder %s20, 0
      %p55 = por %p53, %p54
      %p56 = scmp.ne.s32.totalorder %s42, %s43
      %p57 = scmp.eq.s32.totalorder %s21, 1
      %p58 = por %p56, %p57
      %p60 = scmp.ne.s32.totalorder %s43, %s59
      %p61 = scmp.eq.s32.totalorder %s21, 0
      %p62 = por %p60, %p61
      %s63 = ssub.s32 %s23, %s30
      %p64 = scmp.eq.s32.totalorder %s63, 0
      %s66 = sadd.s32 %s65, 1
      %s67 = scalar_select %p64, %s65, %s66
      %p70 = pneg %p64
      %p71 = scmp.eq.s32.totalorder %s15, 1
      %p72 = por %p70, %p71
      %p73 = scmp.ne.s32.totalorder %s65, %s68
      %p74 = scmp.eq.s32.totalorder %s15, 0
      %p75 = por %p73, %p74
      %p76 = scmp.ne.s32.totalorder %s65, %s68
      %p77 = scmp.eq.s32.totalorder %s20, 1
      %p78 = por %p76, %p77
      %p79 = scmp.ne.s32.totalorder %s68, %s69
      %p80 = scmp.eq.s32.totalorder %s20, 0
      %p81 = por %p79, %p80
      %p82 = scmp.ne.s32.totalorder %s68, %s69
      %p83 = scmp.eq.s32.totalorder %s21, 1
      %p84 = por %p82, %p83
      %p86 = scmp.ne.s32.totalorder %s69, %s85
      %p87 = scmp.eq.s32.totalorder %s21, 0
      %p88 = por %p86, %p87
      %s89 = ssub.s32 %s22, %s34
      %s90 = ssub.s32 %s23, %s30
      %s91 = sor.u32 %s89, %s90
      %p92 = scmp.eq.s32.totalorder %s91, 0
      %s94 = sadd.s32 %s93, 1
      %s95 = scalar_select %p92, %s93, %s94
      %p98 = pneg %p92
      %p99 = scmp.eq.s32.totalorder %s15, 1
      %p100 = por %p98, %p99
      %p101 = scmp.ne.s32.totalorder %s93, %s96
      %p102 = scmp.eq.s32.totalorder %s15, 0
      %p103 = por %p101, %p102
      %p104 = scmp.ne.s32.totalorder %s93, %s96
      %p105 = scmp.eq.s32.totalorder %s20, 1
      %p106 = por %p104, %p105
      %p107 = scmp.ne.s32.totalorder %s96, %s97
      %p108 = scmp.eq.s32.totalorder %s20, 0
      %p109 = por %p107, %p108
      %p110 = scmp.ne.s32.totalorder %s96, %s97
      %p111 = scmp.eq.s32.totalorder %s21, 1
      %p112 = por %p110, %p111
      %p114 = scmp.ne.s32.totalorder %s97, %s113
      %p115 = scmp.eq.s32.totalorder %s21, 0
      %p116 = por %p114, %p115
      %p117 = scmp.le.s32.totalorder 1, %s15
      %p118 = scmp.lt.s32.totalorder %s15, 3
      %p119 = pnand %p117, %p118
      %p120 = pneg %p119
      // Predicated region
      $region9: #{tpu_custom_call.1} parent=5 // pred_check
        _
      $region10: #{tpu_custom_call.1} parent=5 // pred_check_branch
        %122 = sbr.rel (%p119) target = $region12
      $region11: #{tpu_custom_call.1} parent=5 // pred_region
        %s123 = ssub.s32 %s15, 1
        // Predicated region
        $region13: #{tpu_custom_call.1} parent=11 // pred_check
          %p124 = pneg %p81
        $region14: #{tpu_custom_call.1} parent=11 // pred_check_branch
          %126 = sbr.rel (%p124) target = $region16
        $region15: #{tpu_custom_call.1} parent=11 // pred_region
          %128 = vsyncadd [#allocation6], 0
          %s129 = scalar_lea.hbm %s1, %s25
          %s131 = sshll.u32 %s129, 4
          %s132 = int_to_ptr.hbm [resolvable:$true] %s131
          %s133 = sshll.u32 [#allocation5], 4
          %s134 = int_to_ptr.vmem [resolvable:$true] %s133
          %136 = dma.hbm_to_vmem [thread:$0]  %s132, 16, %s134, [#allocation6]
        $region16: #{tpu_custom_call.1} parent=11 // pred_fallthru
          _
      $region12: #{tpu_custom_call.1} parent=5 // pred_fallthru
        _
      %p137 = scmp.lt.s32.totalorder %s15, 2
      // Predicated region
      $region17: #{tpu_custom_call.1} parent=5 // pred_check
        %p138 = pneg %p137
      $region18: #{tpu_custom_call.1} parent=5 // pred_check_branch
        %140 = sbr.rel (%p138) target = $region20
      $region19: #{tpu_custom_call.1} parent=5 // pred_region
        // Predicated region
        $region21: #{tpu_custom_call.1} parent=19 // pred_check
          %p141 = pneg %p49
        $region22: #{tpu_custom_call.1} parent=19 // pred_check_branch
          %143 = sbr.rel (%p141) target = $region24
        $region23: #{tpu_custom_call.1} parent=19 // pred_region
          %s144 = sand.u32 %s39, 1
          %s145 = scalar_lea.sflag [#allocation3], %s144
          %s146 = sand.u32 %s39, 1
          %s147 = smul.addr %s146, 8
          %s148 = scalar_lea.vmem [#allocation2], %s147
          %150 = vsyncadd %s145, 0
          %s151 = sadd.s32 %s23, %s22
          %s152 = smul.addr %s151, 8
          %s153 = scalar_lea.hbm %s0, %s152
          %s155 = sshll.u32 %s153, 4
          %s156 = int_to_ptr.hbm [resolvable:$true] %s155
          %s157 = sshll.u32 %s148, 4
          %s158 = int_to_ptr.vmem [resolvable:$true] %s157
          %160 = dma.hbm_to_vmem [thread:$0]  %s156, 128, %s158, %s145
        $region24: #{tpu_custom_call.1} parent=19 // pred_fallthru
          _
      $region20: #{tpu_custom_call.1} parent=5 // pred_fallthru
        _
      %p161 = scmp.le.s32.totalorder 1, %s15
      %p162 = scmp.lt.s32.totalorder %s15, 3
      %p163 = pnand %p161, %p162
      %p164 = pneg %p163
      // Predicated region
      $region25: #{tpu_custom_call.1} parent=5 // pred_check
        _
      $region26: #{tpu_custom_call.1} parent=5 // pred_check_branch
        %166 = sbr.rel (%p163) target = $region28
      $region27: #{tpu_custom_call.1} parent=5 // pred_region
        %s167 = ssub.s32 %s15, 1
        %s168 = sand.u32 %s42, 1
        %s169 = scalar_lea.sflag [#allocation3], %s168
        %s170 = sand.u32 %s42, 1
        %s171 = smul.addr %s170, 8
        %s172 = scalar_lea.vmem [#allocation2], %s171
        // Predicated region
        $region29: #{tpu_custom_call.1} parent=27 // pred_check
          %p173 = pneg %p55
        $region30: #{tpu_custom_call.1} parent=27 // pred_check_branch
          %175 = sbr.rel (%p173) target = $region32
        $region31: #{tpu_custom_call.1} parent=27 // pred_region
          %177 = dma.done %s169, 128
        $region32: #{tpu_custom_call.1} parent=27 // pred_fallthru
          _
        // Predicated region
        $region33: #{tpu_custom_call.1} parent=27 // pred_check
          %p178 = pneg %p81
        $region34: #{tpu_custom_call.1} parent=27 // pred_check_branch
          %180 = sbr.rel (%p178) target = $region36
        $region35: #{tpu_custom_call.1} parent=27 // pred_region
          %182 = dma.done [#allocation6], 16
        $region36: #{tpu_custom_call.1} parent=27 // pred_fallthru
          _
        %s183 = sand.u32 %s42, 1
        %s184 = scalar_lea.sflag [#allocation3], %s183
        %s185 = sand.u32 %s42, 1
        %s186 = smul.addr %s185, 8
        %s187 = scalar_lea.vmem [#allocation2], %s186
        %p188 = pneg %p55
        %p189 = pneg %p52
        %p190 = pneg %p81
        %p191 = pneg %p78
        %p192 = pneg %p109
        %p193 = pneg %p106
        %s194 = sand.u32 %s96, 1
        %s195 = scalar_lea.sflag [#allocation4], %s194
        %s196 = sand.u32 %s96, 1
        %s197 = smul.addr %s196, 8
        %s198 = scalar_lea.vmem [#allocation7], %s197
        %v199 = vld [vmem:[%s172] sm:$0xff]
        %v200 = vld [vmem:[#allocation5] sm:$0x1]
        %v202 = vperm.slane %v200, 0
        %v204 = vmul.f32 %v199, %v202
        %205 = vst [vmem:[%s198] sm:$0xff] %v204
        %s206 = sand.u32 %s96, 1
        %s207 = scalar_lea.sflag [#allocation4], %s206
        %s208 = sand.u32 %s96, 1
        %s209 = smul.addr %s208, 8
        %s210 = scalar_lea.vmem [#allocation7], %s209
        // Predicated region
        $region37: #{tpu_custom_call.1} parent=27 // pred_check
          %p211 = pneg %p106
        $region38: #{tpu_custom_call.1} parent=27 // pred_check_branch
          %213 = sbr.rel (%p211) target = $region40
        $region39: #{tpu_custom_call.1} parent=27 // pred_region
          %215 = vsyncadd %s207, 0
          %s216 = sadd.s32 %s25, %s24
          %s217 = smul.addr %s216, 8
          %s218 = scalar_lea.hbm %s2, %s217
          %s220 = sshll.u32 %s210, 4
          %s221 = int_to_ptr.vmem [resolvable:$true] %s220
          %s222 = sshll.u32 %s218, 4
          %s223 = int_to_ptr.hbm [resolvable:$true] %s222
          %225 = dma.vmem_to_hbm [thread:$0]  %s221, 128, %s223, %s207
        $region40: #{tpu_custom_call.1} parent=27 // pred_fallthru
          _
      $region28: #{tpu_custom_call.1} parent=5 // pred_fallthru
        _
      %p226 = scmp.le.s32.totalorder 2, %s15
      // Predicated region
      $region41: #{tpu_custom_call.1} parent=5 // pred_check
        %p227 = pneg %p226
      $region42: #{tpu_custom_call.1} parent=5 // pred_check_branch
        %229 = sbr.rel (%p227) target = $region44
      $region43: #{tpu_custom_call.1} parent=5 // pred_region
        %s230 = ssub.s32 %s15, 2
        // Predicated region
        $region45: #{tpu_custom_call.1} parent=43 // pred_check
          %p231 = pneg %p112
        $region46: #{tpu_custom_call.1} parent=43 // pred_check_branch
          %233 = sbr.rel (%p231) target = $region48
        $region47: #{tpu_custom_call.1} parent=43 // pred_region
          %s234 = sand.u32 %s97, 1
          %s235 = scalar_lea.sflag [#allocation4], %s234
          %s236 = sand.u32 %s97, 1
          %s237 = smul.addr %s236, 8
          %s238 = scalar_lea.vmem [#allocation7], %s237
          %240 = dma.done %s235, 128
        $region48: #{tpu_custom_call.1} parent=43 // pred_fallthru
          _
      $region44: #{tpu_custom_call.1} parent=5 // pred_fallthru
        _
    $region6: #{tpu_custom_call.1} parent=1 // loop_footer
      %s19 = sadd.s32 1, %s15
    $region7: #{tpu_custom_call.1} parent=1 // loop_footer_branch
      %14 = sbr.rel target = $region3
    $region8: #{tpu_custom_call.1} parent=1 // loop_exit
      _
    %241 = vsyncpa [#allocation3], 1
    %s242 = scalar_lea.sflag [#allocation3], 1
    %243 = vsyncpa %s242, 1
    %244 = vsyncpa [#allocation6], 1
    %245 = vsyncpa [#allocation4], 1
    %s246 = scalar_lea.sflag [#allocation4], 1
    %247 = vsyncpa %s246, 1

</llo_original>
